<compile_context>
chip_gen: v7x
topology: tpu7x:2x2x1
jax: 0.10.0
libtpu: 0.0.40
codegen_flags: <defaults>
</compile_context>

<pallas_src>
import math

import jax
import jax.numpy as jnp
from jax.experimental import pallas as pl
from jax.experimental.pallas import tpu as pltpu


def build_pe(max_len: int, num_channels: int, dtype=jnp.float32) -> jnp.ndarray:
    """Deterministic sinusoidal table, identical to the PyTorch __init__."""
    position = jnp.arange(0, max_len, dtype=jnp.float32)[:, None]          # (L, 1)
    div_term = jnp.exp(
        jnp.arange(0, num_channels, 2, dtype=jnp.float32)
        * (-math.log(10000.0) / num_channels)
    )                                                                       # (ceil(C/2),)
    pe = jnp.zeros((max_len, num_channels), dtype=jnp.float32)
    pe = pe.at[:, 0::2].set(jnp.sin(position * div_term))
    # guard odd num_channels: cos fills only floor(C/2) columns
    pe = pe.at[:, 1::2].set(jnp.cos(position * div_term[: num_channels // 2]))
    # unsqueeze(0).transpose(0,1).squeeze() is a no-op on the (L, C) layout
    return pe.astype(dtype)


def _pe_add_kernel(x_ref, pe_ref, o_ref):
    # x_ref: (bt, lane); pe_ref: (1, lane) broadcast over sublanes; o_ref: (bt, lane).
    # Cast x up on the VPU (free) so PyTorch's type promotion is preserved.
    o_ref[...] = x_ref[...].astype(o_ref.dtype) + pe_ref[...]


def _sublane_quantum(itemsize: int) -> int:
    # Sub-32-bit dtypes pack along sublanes: bf16 vreg = [16,128], int8/fp8 = [32,128].
    return {8: 8, 4: 8, 2: 16, 1: 32}.get(itemsize, 8)


def _choose_tiles(B: int, L: int, x_item: int, out_item: int,
                  target_bytes: int = 2 << 20, vmem_budget: int = 16 << 20):
    """Pick (bt, lane_tile, L_pad) for an (B, L) elementwise add.

    Returns a block shape whose sublane dim is dtype-aligned (or full B),
    whose lane dim is a 128-multiple (or full L), fits ~target_bytes per
    block, and keeps 2*(x + out + pe_padded) under vmem_budget.
    """
    sub = _sublane_quantum(min(x_item, out_item))
    big = max(x_item, out_item)

    def fits(bt, lane):
        x_b = bt * lane * x_item
        o_b = bt * lane * out_item
        pe_b = 8 * lane * out_item            # (1, lane) block pads to 8 sublanes in VMEM
        return 2 * (x_b + o_b + pe_b) <= vmem_budget   # double-buffered

    # ---- Path A: full-row tiles (lane_tile = L), tile only the batch axis. ----
    row_bytes = max(1, L * big)
    rows_budget = max(1, target_bytes // row_bytes)
    if B <= rows_budget and fits(B, L):
        bt = B
    else:
        bt = min(B, max(sub, (rows_budget // sub) * sub))

    if fits(bt, L):
        lane_tile, L_pad = L, L
    else:
        # ---- Path B: even a small batch slab is too large -> split the lane axis. ----
        bt = min(B, sub)
        lane_budget = max(128, target_bytes // max(1, bt * big))
        lane_tile = max(128, (lane_budget // 128) * 128)
        while lane_tile > 128 and not fits(bt, lane_tile):
            lane_tile = max(128, (lane_tile // 2 // 128) * 128)
        L_pad = pl.cdiv(L, 128) * 128          # keep every lane block 128-dense
        lane_tile = min(lane_tile, L_pad)

    # ---- Megacore: guarantee >= 2 blocks on a parallel axis for big inputs ----
    # so v7x's two TensorCores both get work (single-block grid = one TC idle).
    total_bytes = B * L * big
    if pl.cdiv(L_pad, lane_tile) * pl.cdiv(B, bt) == 1 and total_bytes > (2 << 20):
        if B >= 2:
            half = ((bt + 1) // 2 + sub - 1) // sub * sub
            bt = min(B, max(sub, half))
        if pl.cdiv(B, bt) == 1 and lane_tile % 256 == 0:
            lane_tile //= 2

    return bt, lane_tile, L_pad


def positional_encoding(x: jnp.ndarray, pe: jnp.ndarray) -> jnp.ndarray:
    """x: (B, S, C); pe: (max_len, C). Returns x + pe[:S, :] broadcast over batch."""
    B, S, C = x.shape
    L = S * C

    # Match PyTorch type promotion (bf16 x + f32 pe -> f32 output).
    out_dtype = jnp.result_type(x.dtype, pe.dtype)
    x_item = jnp.dtype(x.dtype).itemsize
    out_item = jnp.dtype(out_dtype).itemsize

    bt, lane_tile, L_pad = _choose_tiles(B, L, x_item, out_item)

    x_flat = x.reshape(B, L)                                # free layout change
    pe_flat = pe[:S, :].reshape(1, L).astype(out_dtype)     # static slice
    if L_pad != L:
        # Lane-split path with unaligned S*C: pad to a 128 multiple so every
        # block stays lane-dense (no masked vst on the bulk of the output).
        x_flat = jnp.pad(x_flat, ((0, 0), (0, L_pad - L)))
        pe_flat = jnp.pad(pe_flat, ((0, 0), (0, L_pad - L)))

    grid = (pl.cdiv(L_pad, lane_tile), pl.cdiv(B, bt))      # innermost = batch tiles

    # TODO(synk): if the caller can donate x (and dtypes match), pass
    #             input_output_aliases={0: 0} to save an HBM allocation; better
    #             still, fuse this add into the adjacent producer/consumer op.
    out_flat = pl.pallas_call(
        _pe_add_kernel,
        out_shape=jax.ShapeDtypeStruct((B, L_pad), out_dtype),
        grid_spec=pltpu.PrefetchScalarGridSpec(
            num_scalar_prefetch=0,
            grid=grid,
            in_specs=[
                # x tile: changes every step
                pl.BlockSpec((bt, lane_tile), lambda j, i: (i, j)),
                # pe tile: constant across the innermost (batch) axis -> no re-DMA
                pl.BlockSpec((1, lane_tile), lambda j, i: (0, j)),
            ],
            out_specs=pl.BlockSpec((bt, lane_tile), lambda j, i: (i, j)),
        ),
        compiler_params=pltpu.CompilerParams(
            dimension_semantics=("parallel", "parallel"),
            vmem_limit_bytes=32 * 1024 * 1024,
        ),
    )(x_flat, pe_flat)

    if L_pad != L:
        out_flat = out_flat[:, :L]
    return out_flat.reshape(B, S, C)


class PositionalEncodingPallas:
    """Mirror of the PyTorch module (dropout p=0.0 is the identity)."""

    def __init__(self, max_len: int, num_channels: int, dropout: float = 0.0):
        assert dropout == 0.0, "only dropout p=0.0 (identity) is implemented"
        # TODO(synk): nonzero dropout would need pltpu.prng_seed/prng_random_bits
        #             with 1/(1-p) scaling; not required for this module's default.
        self.max_len = max_len
        self.num_channels = num_channels
        self.dropout_p = dropout
        self.pe = build_pe(max_len, num_channels)

    def __call__(self, x: jnp.ndarray) -> jnp.ndarray:
        assert self.dropout_p == 0.0, "only dropout p=0.0 (identity) is implemented"
        return positional_encoding(x, self.pe)


if __name__ == "__main__":
    key = jax.random.PRNGKey(0)
    batch, seq, channels, max_len = 2, 8, 32, 16

    x = jax.random.normal(key, (batch, seq, channels), dtype=jnp.float32)

    module = PositionalEncodingPallas(max_len=max_len, num_channels=channels, dropout=0.0)
    out = module(x)
    out = jax.block_until_ready(out)

    # sanity check against a pure-JAX reference
    ref = x + module.pe[:seq, :][None, :, :]
    assert out.shape == (batch, seq, channels)
    assert out.dtype == ref.dtype
    assert jnp.allclose(out, ref, atol=1e-6), "mismatch vs reference"

    print("KERNEL_OK")
</pallas_src>

<mosaic_0001>
module attributes {stable_mosaic.version = 11 : i64} {
  func.func @_pe_add_kernel(%arg0: i32, %arg1: i32, %arg2: memref<2x256xf32, #tpu.memory_space<vmem>>, %arg3: memref<1x256xf32, #tpu.memory_space<vmem>>, %arg4: memref<2x256xf32, #tpu.memory_space<vmem>>) attributes {dimension_semantics = [#tpu.dimension_semantics<parallel>, #tpu.dimension_semantics<parallel>], iteration_bounds = array<i64: 1, 1>, scalar_prefetch = 0 : i64, scratch_operands = 0 : i64, tpu.core_type = #tpu.core_type<tc>, window_params = [{transform_indices = @transform_0, window_bounds = array<i64: 2, 256>}, {transform_indices = @transform_1, window_bounds = array<i64: 1, 256>}, {transform_indices = @transform_2, window_bounds = array<i64: 2, 256>}]} {
    %c0 = arith.constant 0 : index
    %c0_0 = arith.constant 0 : index
    %0 = vector.load %arg2[%c0, %c0_0] : memref<2x256xf32, #tpu.memory_space<vmem>>, vector<2x256xf32>
    %c0_1 = arith.constant 0 : index
    %c0_2 = arith.constant 0 : index
    %1 = vector.load %arg3[%c0_1, %c0_2] : memref<1x256xf32, #tpu.memory_space<vmem>>, vector<1x256xf32>
    %2 = vector.broadcast %1 : vector<1x256xf32> to vector<2x256xf32>
    %3 = arith.addf %0, %2 : vector<2x256xf32>
    %c0_3 = arith.constant 0 : index
    %c0_4 = arith.constant 0 : index
    %4 = vector.load %arg4[%c0_3, %c0_4] : memref<2x256xf32, #tpu.memory_space<vmem>>, vector<2x256xf32>
    tpu.vector_store %arg4[%c0_3, %c0_4], %3 {strides = array<i32>} : memref<2x256xf32, #tpu.memory_space<vmem>>, vector<2x256xf32>,
    return
  }
  func.func @transform_0(%arg0: i32, %arg1: i32) -> (i32, i32) {
    %c0_i32 = arith.constant 0 : i32
    return %arg1, %arg0 : i32, i32
  }
  func.func @transform_1(%arg0: i32, %arg1: i32) -> (i32, i32) {
    %c0_i32 = arith.constant 0 : i32
    %c0_i32_0 = arith.constant 0 : i32
    return %c0_i32, %arg0 : i32, i32
  }
  func.func @transform_2(%arg0: i32, %arg1: i32) -> (i32, i32) {
    %c0_i32 = arith.constant 0 : i32
    return %arg1, %arg0 : i32, i32
  }
}

</mosaic_0001>

<llo_original>
// kernel: tpu_custom_call.1
$region0: #{tpu_custom_call.1}
  #allocation0 [shape = 'u32[]', space=smem, size = 0x4, offset = 0x4, fixed_abs, tag = 'smem constant byte address 0x4 - core index']
  #allocation1 [shape = 'u32[144,128]{1,0:T(1,128)}', space=vmem, size = 0x12000, scoped, tag = 'internal scratch']
  %s0 = inlined_call_operand.hbm [shape: f32[2,256], index: 0, kind: input, shape index: {}]
  %s1 = inlined_call_operand.vmem [shape: f32[1,256], index: 1, kind: input, shape index: {}]
  %s2 = inlined_call_operand.hbm [shape: f32[2,256], index: 2, kind: output, shape index: {}]
  %s3 = sld [smem:[#allocation0]]
  $region22: #{tpu_custom_call.1} parent=0
    _
  %s5 = ssub.s32 1, %s3
  %s6 = scalar_select 0, %s5, %s3
  $region1: #{tpu_custom_call.1} parent=0
    #allocation2 [shape = 'u8[2048]{0}', space=vmem, size = 0x800, scoped, tag = 'input window, operand 0, single buffered']
    #allocation3 [shape = 's32[1]{0}', space=sflag, size = 0x4, scoped, tag = 'scoped memory for tpu_custom_call.1']
    #allocation4 [shape = 's32[1]{0}', space=sflag, size = 0x4, scoped, tag = 'scoped memory for tpu_custom_call.1']
    #allocation5 [shape = 'u8[2048]{0}', space=vmem, size = 0x800, scoped, tag = 'output window, operand 0, single buffered']
    %7 = vsyncpa [#allocation3], 0
    %8 = vsyncpa [#allocation4], 0
    // Predicated region
    $region2: #{tpu_custom_call.1} parent=1 // pred_check
      _
    $region3: #{tpu_custom_call.1} parent=1 // pred_check_branch
      %10 = sbr.rel (0) target = $region5
    $region4: #{tpu_custom_call.1} parent=1 // pred_region
      %s12 = ssub.s32 64, 64
      %13 = vsyncadd [#allocation3], %s12
      %s15 = sshll.u32 [#allocation2], 4
      %s16 = int_to_ptr.vmem [resolvable:$true] %s15
      %18 = dma.hbm_to_vmem [thread:$0]  %s0, 64, %s16, [#allocation3]
    $region5: #{tpu_custom_call.1} parent=1 // pred_fallthru
      _
    // Predicated region
    $region6: #{tpu_custom_call.1} parent=1 // pred_check
      _
    $region7: #{tpu_custom_call.1} parent=1 // pred_check_branch
      %20 = sbr.rel (0) target = $region9
    $region8: #{tpu_custom_call.1} parent=1 // pred_region
      _
    $region9: #{tpu_custom_call.1} parent=1 // pred_fallthru
      _
    // Predicated region
    $region10: #{tpu_custom_call.1} parent=1 // pred_check
      _
    $region11: #{tpu_custom_call.1} parent=1 // pred_check_branch
      %22 = sbr.rel (0) target = $region13
    $region12: #{tpu_custom_call.1} parent=1 // pred_region
      %23 = dma.done [#allocation3], 64
    $region13: #{tpu_custom_call.1} parent=1 // pred_fallthru
      _
    %v24 = vld [vmem:[#allocation2] sm:$0xf]
    %v25 = vld [vmem:[%s1] sm:$0x3]
    %v27 = vlaneseq
    %v28 = vshrl.u32 %v27, 7
    %v29 = vsub.s32 0, %v28
    %v30 = vrot.slane %v25, %v29
    %v31 = vlaneseq
    %v32 = vshrl.u32 %v31, 7
    %v33 = vsub.s32 1, %v32
    %v34 = vrot.slane %v25, %v33
    %v35 = vcombine.low %v30, %v34
    %v37 = vunpack.c.l.s4 1983009808
    %v38 = vunpack.c.0.s8 %v37
    %v39 = vlaneseq
    %v40 = vshrl.u32 %v39, 7
    %v41 = vsub.s32 %v38, %v40
    %v42 = vrot.slane %v35, %v41
    %v44 = vadd.f32 %v24, %v42
    %45 = vst [vmem:[#allocation5] sm:$0xf] %v44
    // Predicated region
    $region14: #{tpu_custom_call.1} parent=1 // pred_check
      _
    $region15: #{tpu_custom_call.1} parent=1 // pred_check_branch
      %47 = sbr.rel (0) target = $region17
    $region16: #{tpu_custom_call.1} parent=1 // pred_region
      %s49 = ssub.s32 64, 64
      %50 = vsyncadd [#allocation4], %s49
      %s52 = sshll.u32 [#allocation5], 4
      %s53 = int_to_ptr.vmem [resolvable:$true] %s52
      %55 = dma.vmem_to_hbm [thread:$0]  %s53, 64, %s2, [#allocation4]
    $region17: #{tpu_custom_call.1} parent=1 // pred_fallthru
      _
    // Predicated region
    $region18: #{tpu_custom_call.1} parent=1 // pred_check
      _
    $region19: #{tpu_custom_call.1} parent=1 // pred_check_branch
      %57 = sbr.rel (0) target = $region21
    $region20: #{tpu_custom_call.1} parent=1 // pred_region
      %58 = dma.done [#allocation4], 64
    $region21: #{tpu_custom_call.1} parent=1 // pred_fallthru
      _
    %59 = vsyncpa [#allocation3], 1
    %60 = vsyncpa [#allocation4], 1

</llo_original>
